<compile_context>
chip_gen: v7x
topology: tpu7x:2x2x1
jax: 0.10.0
libtpu: 0.0.40
codegen_flags: <defaults>
</compile_context>

<pallas_src>
import jax
import jax.numpy as jnp
from jax.experimental import pallas as pl
from jax.experimental.pallas import tpu as pltpu


LANE = 128
OUT_PAD = 8          # true output dim is 1; pad only to 8 lanes (compact slab)


def _round_up(v, m):
    return ((v + m - 1) // m) * m


def _leaky_relu(v, negative_slope=0.2):
    # max(v, a*v) == leaky_relu(v, a) for 0 < a < 1: mul + max (2 VALU ops)
    # instead of cmp + mul + select (3 ops).
    return jnp.maximum(v, negative_slope * v)


def mlp_kernel(x_ref,
               w1_ref, b1_ref,
               w2_ref, b2_ref,
               w3_ref, b3_ref,
               w4_ref, b4_ref,
               w5_ref, b5_ref,
               o_ref):
    """Fused forward pass for one batch tile.  All weights VMEM-resident.

    Matmul inputs (x, weights, inter-layer activations) are bf16; accumulation,
    bias add and LeakyReLU stay f32 (preferred_element_type=jnp.float32).
    Dropout(p=0) is the identity and is elided.
    """
    h = x_ref[...]                                         # bf16 [tile, in_pad]
    for w_ref, b_ref in ((w1_ref, b1_ref), (w2_ref, b2_ref),
                         (w3_ref, b3_ref), (w4_ref, b4_ref)):
        a = jnp.dot(h, w_ref[...], preferred_element_type=jnp.float32) + b_ref[...]
        h = _leaky_relu(a).astype(jnp.bfloat16)
    out = jnp.dot(h, w5_ref[...], preferred_element_type=jnp.float32) + b5_ref[...]
    o_ref[...] = out.astype(o_ref.dtype)                   # [tile, 8] f32 (col 0 real)


def prepare_params(params):
    """Zero-pad hidden dims to lane multiples (200->256, 70->128, 20->128),
    pad the final output dim only to 8 (compact output slab), cast weights to
    bf16, keep biases f32.  Layer-1 fan-in is lane-padded only when it is large
    and misaligned (padding a tiny feature dim would just inflate x DMA bytes).

    Input `params` holds pre-transposed weights w{i}: [in, out], b{i}: [1, out].
    Zero padding is a no-op through Linear + LeakyReLU (LeakyReLU(0) == 0 and
    padded biases are zero)."""
    prepped = {}
    prev_out_pad = None
    for n in range(1, 6):
        w = params[f"w{n}"].astype(jnp.float32)
        b = params[f"b{n}"].astype(jnp.float32)
        fin, fout = w.shape
        if prev_out_pad is None:
            fin_pad = _round_up(fin, LANE) if (fin > LANE and fin % LANE) else fin
        else:
            fin_pad = prev_out_pad
        fout_pad = OUT_PAD if n == 5 else _round_up(fout, LANE)
        w_p = jnp.zeros((fin_pad, fout_pad), jnp.float32).at[:fin, :fout].set(w)
        b_p = jnp.zeros((1, fout_pad), jnp.float32).at[:, :fout].set(b)
        prepped[f"w{n}"] = w_p.astype(jnp.bfloat16)        # MXU inputs in bf16
        prepped[f"b{n}"] = b_p                             # bias stays f32
        prev_out_pad = fout_pad
    return prepped


def _num_tensorcores():
    """2 TensorCores per chip on v7x, 1 on v5e/v6e.  Best-effort query."""
    try:
        dev = jax.devices()[0]
        n = getattr(dev, "num_cores", None)
        if n:
            return int(n)
        kind = str(getattr(dev, "device_kind", "")).lower()
        if "v7" in kind or "7x" in kind:
            return 2
    except Exception:
        pass
    return 1


def _choose_batch_tile(B, num_cores):
    """Pick the batch tile (rows per grid step).

    * Tiles are multiples of 16 sublanes (bf16 native) -- no 8-row tiles.
    * Tiny batches run as a single grid step on single-TC chips (the grid is a
      serial loop there); only v7x's 2 TCs benefit from forcing >=2 steps.
    * Large batches: 256-1024-row tiles with >=2 steps (hides the pipeline
      prologue, keeps the MXU fed); 2048-row tiles only on 2-TC chips.
    """
    if B <= 256:
        if num_cores >= 2 and B >= 64 and (B // 2) % 16 == 0:
            return B // 2              # give both v7x TCs a >=32-row chunk
        return B                       # single grid step
    candidates = (2048, 1024, 512, 256) if num_cores >= 2 else (1024, 512, 256)
    for c in candidates:
        if B % c == 0 and B // c >= 2:
            return c
    for c in (128, 64, 32, 16):
        if B % c == 0:
            return c
    return B


def deep_neural_network_forward(x, prepped_params, *, true_out_dim=1,
                                batch_tile=None):
    """Run the fused MLP kernel.

    x:              [B, input_num] float32 (cast to bf16 at the call boundary)
    prepped_params: output of prepare_params()
    Returns [B, true_out_dim] float32.
    """
    B, fin = x.shape
    fin_pad = prepped_params["w1"].shape[0]
    out_pad = prepped_params["w5"].shape[1]                # 8-wide compact slab

    if batch_tile is None:
        batch_tile = _choose_batch_tile(B, _num_tensorcores())
    assert B % batch_tile == 0, "batch must be divisible by batch_tile"

    xb = x.astype(jnp.bfloat16)
    if fin_pad != fin:
        xb = jnp.zeros((B, fin_pad), jnp.bfloat16).at[:, :fin].set(xb)

    # Weights / biases are tiny (<0.5 MiB total) and use constant-index
    # BlockSpecs, so they are DMA'd once and stay VMEM-resident across steps.
    def full_spec(arr):
        return pl.BlockSpec(arr.shape, lambda i: (0, 0))

    in_specs = [pl.BlockSpec((batch_tile, fin_pad), lambda i: (i, 0))]
    args = [xb]
    w_bytes = 0
    for n in range(1, 6):
        w = prepped_params[f"w{n}"]
        b = prepped_params[f"b{n}"]
        in_specs += [full_spec(w), full_spec(b)]
        args += [w, b]
        w_bytes += w.size * w.dtype.itemsize + b.size * b.dtype.itemsize

    out_spec = pl.BlockSpec((batch_tile, out_pad), lambda i: (i, 0))

    # VMEM budget: double-buffered x/out tiles + resident weights + fused-layer
    # activations (widest hidden layer is 256 lanes) + compiler headroom.
    x_tile_b = batch_tile * fin_pad * 2
    o_tile_b = batch_tile * out_pad * 4
    act_b = batch_tile * 256 * 4
    vmem_limit = 2 * (x_tile_b + o_tile_b + w_bytes) + 6 * act_b + (8 << 20)
    vmem_limit = int(min(max(vmem_limit, 16 << 20), 32 << 20))

    out_padded = pl.pallas_call(
        mlp_kernel,
        out_shape=jax.ShapeDtypeStruct((B, out_pad), jnp.float32),
        grid_spec=pltpu.PrefetchScalarGridSpec(
            num_scalar_prefetch=0,
            grid=(B // batch_tile,),
            in_specs=in_specs,
            out_specs=out_spec,
        ),
        compiler_params=pltpu.CompilerParams(
            dimension_semantics=("parallel",),
            vmem_limit_bytes=vmem_limit,
        ),
    )(*args)

    # Strip the 7 zero-padded columns to recover the module's [B, 1] output
    # (a pass over only B*8 f32, negligible).
    return out_padded[:, :true_out_dim]


def init_params(key, input_num, num_unit_1=200, num_unit_2=70, num_unit_3=20):
    """Deterministic init mimicking nn.Linear's default U(-1/sqrt(fan_in), +1/sqrt(fan_in)).

    Weights are stored transposed relative to PyTorch: [in, out]."""
    dims = [(input_num, num_unit_1),
            (num_unit_1, num_unit_1),
            (num_unit_1, num_unit_2),
            (num_unit_2, num_unit_3),
            (num_unit_3, 1)]
    params = {}
    keys = jax.random.split(key, 2 * len(dims))
    for idx, (fan_in, fan_out) in enumerate(dims):
        bound = 1.0 / jnp.sqrt(jnp.float32(fan_in))
        w = jax.random.uniform(keys[2 * idx], (fan_in, fan_out),
                               minval=-bound, maxval=bound, dtype=jnp.float32)
        b = jax.random.uniform(keys[2 * idx + 1], (1, fan_out),
                               minval=-bound, maxval=bound, dtype=jnp.float32)
        params[f"w{idx + 1}"] = w
        params[f"b{idx + 1}"] = b
    return params


def reference_forward(x, params):
    """Pure-JAX f32 reference of the PyTorch forward (dropout p=0 -> identity)."""
    h = x
    for n in range(1, 5):
        h = _leaky_relu(h @ params[f"w{n}"] + params[f"b{n}"])
    return h @ params["w5"] + params["b5"]


if __name__ == "__main__":
    key = jax.random.PRNGKey(0)
    k_x, k_p = jax.random.split(key)

    batch = 16      # tiny batch: single grid step on v5e/v6e, no sub-16 tiles
    input_num = 32  # small synthetic feature dim (input_num is unset in module)

    x = jax.random.normal(k_x, (batch, input_num), dtype=jnp.float32)
    params = init_params(k_p, input_num)

    prepped = prepare_params(params)
    out = deep_neural_network_forward(x, prepped, true_out_dim=1)
    out = jax.block_until_ready(out)

    ref = reference_forward(x, params)
    assert out.shape == (batch, 1), out.shape
    # bf16 matmul inputs vs f32 reference -> loose (but tight-for-bf16) tolerance.
    assert jnp.allclose(out, ref, atol=5e-2, rtol=5e-2), "mismatch vs reference"

    print("KERNEL_OK")
</pallas_src>

<mosaic_0001>
module attributes {stable_mosaic.version = 11 : i64} {
  func.func @mlp_kernel(%arg0: i32, %arg1: memref<16x32xbf16, #tpu.memory_space<vmem>>, %arg2: memref<32x256xbf16, #tpu.memory_space<vmem>>, %arg3: memref<1x256xf32, #tpu.memory_space<vmem>>, %arg4: memref<256x256xbf16, #tpu.memory_space<vmem>>, %arg5: memref<1x256xf32, #tpu.memory_space<vmem>>, %arg6: memref<256x128xbf16, #tpu.memory_space<vmem>>, %arg7: memref<1x128xf32, #tpu.memory_space<vmem>>, %arg8: memref<128x128xbf16, #tpu.memory_space<vmem>>, %arg9: memref<1x128xf32, #tpu.memory_space<vmem>>, %arg10: memref<128x8xbf16, #tpu.memory_space<vmem>>, %arg11: memref<1x8xf32, #tpu.memory_space<vmem>>, %arg12: memref<16x8xf32, #tpu.memory_space<vmem>>) attributes {dimension_semantics = [#tpu.dimension_semantics<parallel>], iteration_bounds = array<i64: 1>, scalar_prefetch = 0 : i64, scratch_operands = 0 : i64, tpu.core_type = #tpu.core_type<tc>, window_params = [{transform_indices = @transform_0, window_bounds = array<i64: 16, 32>}, {pipeline_mode = #tpu.pipeline_mode<synchronous>, transform_indices = @transform_1, window_bounds = array<i64: 32, 256>}, {pipeline_mode = #tpu.pipeline_mode<synchronous>, transform_indices = @transform_2, window_bounds = array<i64: 1, 256>}, {pipeline_mode = #tpu.pipeline_mode<synchronous>, transform_indices = @transform_3, window_bounds = array<i64: 256, 256>}, {pipeline_mode = #tpu.pipeline_mode<synchronous>, transform_indices = @transform_4, window_bounds = array<i64: 1, 256>}, {pipeline_mode = #tpu.pipeline_mode<synchronous>, transform_indices = @transform_5, window_bounds = array<i64: 256, 128>}, {pipeline_mode = #tpu.pipeline_mode<synchronous>, transform_indices = @transform_6, window_bounds = array<i64: 1, 128>}, {pipeline_mode = #tpu.pipeline_mode<synchronous>, transform_indices = @transform_7, window_bounds = array<i64: 128, 128>}, {pipeline_mode = #tpu.pipeline_mode<synchronous>, transform_indices = @transform_8, window_bounds = array<i64: 1, 128>}, {pipeline_mode = #tpu.pipeline_mode<synchronous>, transform_indices = @transform_9, window_bounds = array<i64: 128, 8>}, {pipeline_mode = #tpu.pipeline_mode<synchronous>, transform_indices = @transform_10, window_bounds = array<i64: 1, 8>}, {transform_indices = @transform_11, window_bounds = array<i64: 16, 8>}]} {
    %c0 = arith.constant 0 : index
    %c0_0 = arith.constant 0 : index
    %0 = vector.load %arg1[%c0, %c0_0] : memref<16x32xbf16, #tpu.memory_space<vmem>>, vector<16x32xbf16>
    %c0_1 = arith.constant 0 : index
    %c0_2 = arith.constant 0 : index
    %1 = vector.load %arg2[%c0_1, %c0_2] : memref<32x256xbf16, #tpu.memory_space<vmem>>, vector<32x256xbf16>
    %cst = arith.constant dense<0.000000e+00> : vector<16x256xf32>
    %2 = tpu.matmul %0, %1, %cst {dimension_numbers = #tpu.dot_dimension_numbers<[1], [0], [0], [1], [0, 0, 1, 1], [], []>} : vector<16x32xbf16>, vector<32x256xbf16>, vector<16x256xf32> -> vector<16x256xf32>
    %c0_3 = arith.constant 0 : index
    %c0_4 = arith.constant 0 : index
    %3 = vector.load %arg3[%c0_3, %c0_4] : memref<1x256xf32, #tpu.memory_space<vmem>>, vector<1x256xf32>
    %4 = vector.broadcast %3 : vector<1x256xf32> to vector<16x256xf32>
    %5 = arith.addf %2, %4 : vector<16x256xf32>
    %cst_5 = arith.constant 2.000000e-01 : f32
    %6 = vector.broadcast %cst_5 : f32 to vector<16x256xf32>
    %7 = arith.mulf %6, %5 : vector<16x256xf32>
    %8 = arith.maximumf %5, %7 : vector<16x256xf32>
    %9 = arith.truncf %8 : vector<16x256xf32> to vector<16x256xbf16>
    %c0_6 = arith.constant 0 : index
    %c0_7 = arith.constant 0 : index
    %10 = vector.load %arg4[%c0_6, %c0_7] : memref<256x256xbf16, #tpu.memory_space<vmem>>, vector<256x256xbf16>
    %cst_8 = arith.constant dense<0.000000e+00> : vector<16x256xf32>
    %11 = tpu.matmul %9, %10, %cst_8 {dimension_numbers = #tpu.dot_dimension_numbers<[1], [0], [0], [1], [0, 0, 1, 1], [], []>} : vector<16x256xbf16>, vector<256x256xbf16>, vector<16x256xf32> -> vector<16x256xf32>
    %c0_9 = arith.constant 0 : index
    %c0_10 = arith.constant 0 : index
    %12 = vector.load %arg5[%c0_9, %c0_10] : memref<1x256xf32, #tpu.memory_space<vmem>>, vector<1x256xf32>
    %13 = vector.broadcast %12 : vector<1x256xf32> to vector<16x256xf32>
    %14 = arith.addf %11, %13 : vector<16x256xf32>
    %cst_11 = arith.constant 2.000000e-01 : f32
    %15 = vector.broadcast %cst_11 : f32 to vector<16x256xf32>
    %16 = arith.mulf %15, %14 : vector<16x256xf32>
    %17 = arith.maximumf %14, %16 : vector<16x256xf32>
    %18 = arith.truncf %17 : vector<16x256xf32> to vector<16x256xbf16>
    %c0_12 = arith.constant 0 : index
    %c0_13 = arith.constant 0 : index
    %19 = vector.load %arg6[%c0_12, %c0_13] : memref<256x128xbf16, #tpu.memory_space<vmem>>, vector<256x128xbf16>
    %cst_14 = arith.constant dense<0.000000e+00> : vector<16x128xf32>
    %20 = tpu.matmul %18, %19, %cst_14 {dimension_numbers = #tpu.dot_dimension_numbers<[1], [0], [0], [1], [0, 0, 1, 1], [], []>} : vector<16x256xbf16>, vector<256x128xbf16>, vector<16x128xf32> -> vector<16x128xf32>
    %c0_15 = arith.constant 0 : index
    %c0_16 = arith.constant 0 : index
    %21 = vector.load %arg7[%c0_15, %c0_16] : memref<1x128xf32, #tpu.memory_space<vmem>>, vector<1x128xf32>
    %22 = vector.broadcast %21 : vector<1x128xf32> to vector<16x128xf32>
    %23 = arith.addf %20, %22 : vector<16x128xf32>
    %cst_17 = arith.constant 2.000000e-01 : f32
    %24 = vector.broadcast %cst_17 : f32 to vector<16x128xf32>
    %25 = arith.mulf %24, %23 : vector<16x128xf32>
    %26 = arith.maximumf %23, %25 : vector<16x128xf32>
    %27 = arith.truncf %26 : vector<16x128xf32> to vector<16x128xbf16>
    %c0_18 = arith.constant 0 : index
    %c0_19 = arith.constant 0 : index
    %28 = vector.load %arg8[%c0_18, %c0_19] : memref<128x128xbf16, #tpu.memory_space<vmem>>, vector<128x128xbf16>
    %cst_20 = arith.constant dense<0.000000e+00> : vector<16x128xf32>
    %29 = tpu.matmul %27, %28, %cst_20 {dimension_numbers = #tpu.dot_dimension_numbers<[1], [0], [0], [1], [0, 0, 1, 1], [], []>} : vector<16x128xbf16>, vector<128x128xbf16>, vector<16x128xf32> -> vector<16x128xf32>
    %c0_21 = arith.constant 0 : index
    %c0_22 = arith.constant 0 : index
    %30 = vector.load %arg9[%c0_21, %c0_22] : memref<1x128xf32, #tpu.memory_space<vmem>>, vector<1x128xf32>
    %31 = vector.broadcast %30 : vector<1x128xf32> to vector<16x128xf32>
    %32 = arith.addf %29, %31 : vector<16x128xf32>
    %cst_23 = arith.constant 2.000000e-01 : f32
    %33 = vector.broadcast %cst_23 : f32 to vector<16x128xf32>
    %34 = arith.mulf %33, %32 : vector<16x128xf32>
    %35 = arith.maximumf %32, %34 : vector<16x128xf32>
    %36 = arith.truncf %35 : vector<16x128xf32> to vector<16x128xbf16>
    %c0_24 = arith.constant 0 : index
    %c0_25 = arith.constant 0 : index
    %37 = vector.load %arg10[%c0_24, %c0_25] : memref<128x8xbf16, #tpu.memory_space<vmem>>, vector<128x8xbf16>
    %cst_26 = arith.constant dense<0.000000e+00> : vector<16x8xf32>
    %38 = tpu.matmul %36, %37, %cst_26 {dimension_numbers = #tpu.dot_dimension_numbers<[1], [0], [0], [1], [0, 0, 1, 1], [], []>} : vector<16x128xbf16>, vector<128x8xbf16>, vector<16x8xf32> -> vector<16x8xf32>
    %c0_27 = arith.constant 0 : index
    %c0_28 = arith.constant 0 : index
    %39 = vector.load %arg11[%c0_27, %c0_28] : memref<1x8xf32, #tpu.memory_space<vmem>>, vector<1x8xf32>
    %40 = vector.broadcast %39 : vector<1x8xf32> to vector<16x8xf32>
    %41 = arith.addf %38, %40 : vector<16x8xf32>
    %c0_29 = arith.constant 0 : index
    %c0_30 = arith.constant 0 : index
    %42 = vector.load %arg12[%c0_29, %c0_30] : memref<16x8xf32, #tpu.memory_space<vmem>>, vector<16x8xf32>
    tpu.vector_store %arg12[%c0_29, %c0_30], %41 {strides = array<i32>} : memref<16x8xf32, #tpu.memory_space<vmem>>, vector<16x8xf32>,
    return
  }
  func.func @transform_0(%arg0: i32) -> (i32, i32) {
    %c0_i32 = arith.constant 0 : i32
    %c0_i32_0 = arith.constant 0 : i32
    return %arg0, %c0_i32 : i32, i32
  }
  func.func @transform_1(%arg0: i32) -> (i32, i32) {
    %c0_i32 = arith.constant 0 : i32
    %c0_i32_0 = arith.constant 0 : i32
    %c0_i32_1 = arith.constant 0 : i32
    return %c0_i32, %c0_i32_0 : i32, i32
  }
  func.func @transform_2(%arg0: i32) -> (i32, i32) {
    %c0_i32 = arith.constant 0 : i32
    %c0_i32_0 = arith.constant 0 : i32
    %c0_i32_1 = arith.constant 0 : i32
    return %c0_i32, %c0_i32_0 : i32, i32
  }
  func.func @transform_3(%arg0: i32) -> (i32, i32) {
    %c0_i32 = arith.constant 0 : i32
    %c0_i32_0 = arith.constant 0 : i32
    %c0_i32_1 = arith.constant 0 : i32
    return %c0_i32, %c0_i32_0 : i32, i32
  }
  func.func @transform_4(%arg0: i32) -> (i32, i32) {
    %c0_i32 = arith.constant 0 : i32
    %c0_i32_0 = arith.constant 0 : i32
    %c0_i32_1 = arith.constant 0 : i32
    return %c0_i32, %c0_i32_0 : i32, i32
  }
  func.func @transform_5(%arg0: i32) -> (i32, i32) {
    %c0_i32 = arith.constant 0 : i32
    %c0_i32_0 = arith.constant 0 : i32
    %c0_i32_1 = arith.constant 0 : i32
    return %c0_i32, %c0_i32_0 : i32, i32
  }
  func.func @transform_6(%arg0: i32) -> (i32, i32) {
    %c0_i32 = arith.constant 0 : i32
    %c0_i32_0 = arith.constant 0 : i32
    %c0_i32_1 = arith.constant 0 : i32
    return %c0_i32, %c0_i32_0 : i32, i32
  }
  func.func @transform_7(%arg0: i32) -> (i32, i32) {
    %c0_i32 = arith.constant 0 : i32
    %c0_i32_0 = arith.constant 0 : i32
    %c0_i32_1 = arith.constant 0 : i32
    return %c0_i32, %c0_i32_0 : i32, i32
  }
  func.func @transform_8(%arg0: i32) -> (i32, i32) {
    %c0_i32 = arith.constant 0 : i32
    %c0_i32_0 = arith.constant 0 : i32
    %c0_i32_1 = arith.constant 0 : i32
    return %c0_i32, %c0_i32_0 : i32, i32
  }
  func.func @transform_9(%arg0: i32) -> (i32, i32) {
    %c0_i32 = arith.constant 0 : i32
    %c0_i32_0 = arith.constant 0 : i32
    %c0_i32_1 = arith.constant 0 : i32
    return %c0_i32, %c0_i32_0 : i32, i32
  }
  func.func @transform_10(%arg0: i32) -> (i32, i32) {
    %c0_i32 = arith.constant 0 : i32
    %c0_i32_0 = arith.constant 0 : i32
    %c0_i32_1 = arith.constant 0 : i32
    return %c0_i32, %c0_i32_0 : i32, i32
  }
  func.func @transform_11(%arg0: i32) -> (i32, i32) {
    %c0_i32 = arith.constant 0 : i32
    %c0_i32_0 = arith.constant 0 : i32
    return %arg0, %c0_i32 : i32, i32
  }
}

</mosaic_0001>

<llo_original>
// kernel: tpu_custom_call.1
$region0: #{tpu_custom_call.1}
  #allocation0 [shape = 'u32[]', space=smem, size = 0x4, offset = 0x4, fixed_abs, tag = 'smem constant byte address 0x4 - core index']
  #allocation1 [shape = 'u32[144,128]{1,0:T(1,128)}', space=vmem, size = 0x12000, scoped, tag = 'internal scratch']
  %s0 = inlined_call_operand.vmem [shape: bf16[16,32], index: 0, kind: input, shape index: {}]
  %s1 = inlined_call_operand.hbm [shape: bf16[32,256], index: 1, kind: input, shape index: {}]
  %s2 = inlined_call_operand.vmem [shape: f32[1,256], index: 2, kind: input, shape index: {}]
  %s3 = inlined_call_operand.hbm [shape: bf16[256,256], index: 3, kind: input, shape index: {}]
  %s4 = inlined_call_operand.vmem [shape: f32[1,256], index: 4, kind: input, shape index: {}]
  %s5 = inlined_call_operand.hbm [shape: bf16[256,128], index: 5, kind: input, shape index: {}]
  %s6 = inlined_call_operand.vmem [shape: f32[1,128], index: 6, kind: input, shape index: {}]
  %s7 = inlined_call_operand.vmem [shape: bf16[128,128], index: 7, kind: input, shape index: {}]
  %s8 = inlined_call_operand.vmem [shape: f32[1,128], index: 8, kind: input, shape index: {}]
  %s9 = inlined_call_operand.vmem [shape: bf16[128,8], index: 9, kind: input, shape index: {}]
  %s10 = inlined_call_operand.vmem [shape: f32[1,8], index: 10, kind: input, shape index: {}]
  %s11 = inlined_call_operand.vmem [shape: f32[16,8], index: 11, kind: output, shape index: {}]
  %s12 = sld [smem:[#allocation0]]
  $region66: #{tpu_custom_call.1} parent=0
    _
  %s14 = ssub.s32 1, %s12
  %s15 = scalar_select 0, %s14, %s12
  $region1: #{tpu_custom_call.1} parent=0
    #allocation2 [shape = 'u8[16384]{0}', space=vmem, size = 0x4000, scoped, tag = 'input window, operand 1, single buffered']
    #allocation3 [shape = 's32[1]{0}', space=sflag, size = 0x4, scoped, tag = 'scoped memory for tpu_custom_call.1']
    #allocation4 [shape = 'u8[131072]{0}', space=vmem, size = 0x20000, scoped, tag = 'input window, operand 3, single buffered']
    #allocation5 [shape = 's32[1]{0}', space=sflag, size = 0x4, scoped, tag = 'scoped memory for tpu_custom_call.1']
    #allocation6 [shape = 'u8[65536]{0}', space=vmem, size = 0x10000, scoped, tag = 'input window, operand 5, single buffered']
    %16 = vsyncpa [#allocation3], 0
    %17 = vsyncpa [#allocation5], 0
    // Predicated region
    $region2: #{tpu_custom_call.1} parent=1 // pred_check
      _
    $region3: #{tpu_custom_call.1} parent=1 // pred_check_branch
      %19 = sbr.rel (0) target = $region5
    $region4: #{tpu_custom_call.1} parent=1 // pred_region
      _
    $region5: #{tpu_custom_call.1} parent=1 // pred_fallthru
      _
    // Predicated region
    $region6: #{tpu_custom_call.1} parent=1 // pred_check
      _
    $region7: #{tpu_custom_call.1} parent=1 // pred_check_branch
      %21 = sbr.rel (0) target = $region9
    $region8: #{tpu_custom_call.1} parent=1 // pred_region
      %s23 = ssub.s32 512, 512
      %24 = vsyncadd [#allocation3], %s23
      %s25 = sshll.u32 [#allocation2], 4
      %s26 = int_to_ptr.vmem [resolvable:$true] %s25
      %31 = dma.hbm_to_vmem [thread:$0]  %s1, 512, %s26, [#allocation3], 128, 128, 8
    $region9: #{tpu_custom_call.1} parent=1 // pred_fallthru
      _
    // Predicated region
    $region10: #{tpu_custom_call.1} parent=1 // pred_check
      _
    $region11: #{tpu_custom_call.1} parent=1 // pred_check_branch
      %33 = sbr.rel (0) target = $region13
    $region12: #{tpu_custom_call.1} parent=1 // pred_region
      _
    $region13: #{tpu_custom_call.1} parent=1 // pred_fallthru
      _
    // Predicated region
    $region14: #{tpu_custom_call.1} parent=1 // pred_check
      _
    $region15: #{tpu_custom_call.1} parent=1 // pred_check_branch
      %35 = sbr.rel (0) target = $region17
    $region16: #{tpu_custom_call.1} parent=1 // pred_region
      %s37 = ssub.s32 4096, 4096
      %38 = vsyncadd [#allocation5], %s37
      %s39 = sshll.u32 [#allocation4], 4
      %s40 = int_to_ptr.vmem [resolvable:$true] %s39
      %45 = dma.hbm_to_vmem [thread:$0]  %s3, 4096, %s40, [#allocation5], 128, 128, 8
    $region17: #{tpu_custom_call.1} parent=1 // pred_fallthru
      _
    // Predicated region
    $region18: #{tpu_custom_call.1} parent=1 // pred_check
      _
    $region19: #{tpu_custom_call.1} parent=1 // pred_check_branch
      %47 = sbr.rel (0) target = $region21
    $region20: #{tpu_custom_call.1} parent=1 // pred_region
      _
    $region21: #{tpu_custom_call.1} parent=1 // pred_fallthru
      _
    // Predicated region
    $region22: #{tpu_custom_call.1} parent=1 // pred_check
      _
    $region23: #{tpu_custom_call.1} parent=1 // pred_check_branch
      %49 = sbr.rel (0) target = $region25
    $region24: #{tpu_custom_call.1} parent=1 // pred_region
      %s51 = ssub.s32 2048, 2048
      %52 = vsyncadd [#allocation5], %s51
      %s53 = sshll.u32 [#allocation6], 4
      %s54 = int_to_ptr.vmem [resolvable:$true] %s53
      %59 = dma.hbm_to_vmem [thread:$0]  %s5, 2048, %s54, [#allocation5], 64, 64, 4
    $region25: #{tpu_custom_call.1} parent=1 // pred_fallthru
      _
    // Predicated region
    $region26: #{tpu_custom_call.1} parent=1 // pred_check
      _
    $region27: #{tpu_custom_call.1} parent=1 // pred_check_branch
      %61 = sbr.rel (0) target = $region29
    $region28: #{tpu_custom_call.1} parent=1 // pred_region
      _
    $region29: #{tpu_custom_call.1} parent=1 // pred_fallthru
      _
    // Predicated region
    $region30: #{tpu_custom_call.1} parent=1 // pred_check
      _
    $region31: #{tpu_custom_call.1} parent=1 // pred_check_branch
      %63 = sbr.rel (0) target = $region33
    $region32: #{tpu_custom_call.1} parent=1 // pred_region
      _
    $region33: #{tpu_custom_call.1} parent=1 // pred_fallthru
      _
    // Predicated region
    $region34: #{tpu_custom_call.1} parent=1 // pred_check
      _
    $region35: #{tpu_custom_call.1} parent=1 // pred_check_branch
      %65 = sbr.rel (0) target = $region37
    $region36: #{tpu_custom_call.1} parent=1 // pred_region
      _
    $region37: #{tpu_custom_call.1} parent=1 // pred_fallthru
      _
    // Predicated region
    $region38: #{tpu_custom_call.1} parent=1 // pred_check
      _
    $region39: #{tpu_custom_call.1} parent=1 // pred_check_branch
      %67 = sbr.rel (0) target = $region41
    $region40: #{tpu_custom_call.1} parent=1 // pred_region
      _
    $region41: #{tpu_custom_call.1} parent=1 // pred_fallthru
      _
    // Predicated region
    $region42: #{tpu_custom_call.1} parent=1 // pred_check
      _
    $region43: #{tpu_custom_call.1} parent=1 // pred_check_branch
      %69 = sbr.rel (0) target = $region45
    $region44: #{tpu_custom_call.1} parent=1 // pred_region
      _
    $region45: #{tpu_custom_call.1} parent=1 // pred_fallthru
      _
    // Predicated region
    $region46: #{tpu_custom_call.1} parent=1 // pred_check
      _
    $region47: #{tpu_custom_call.1} parent=1 // pred_check_branch
      %71 = sbr.rel (0) target = $region49
    $region48: #{tpu_custom_call.1} parent=1 // pred_region
      %72 = dma.done [#allocation3], 512
    $region49: #{tpu_custom_call.1} parent=1 // pred_fallthru
      _
    // Predicated region
    $region50: #{tpu_custom_call.1} parent=1 // pred_check
      _
    $region51: #{tpu_custom_call.1} parent=1 // pred_check_branch
      %74 = sbr.rel (0) target = $region53
    $region52: #{tpu_custom_call.1} parent=1 // pred_region
      %75 = dma.done [#allocation5], 4096
    $region53: #{tpu_custom_call.1} parent=1 // pred_fallthru
      _
    // Predicated region
    $region54: #{tpu_custom_call.1} parent=1 // pred_check
      _
    $region55: #{tpu_custom_call.1} parent=1 // pred_check_branch
      %77 = sbr.rel (0) target = $region57
    $region56: #{tpu_custom_call.1} parent=1 // pred_region
      %78 = dma.done [#allocation5], 2048
    $region57: #{tpu_custom_call.1} parent=1 // pred_fallthru
      _
    %v80 = vld [vmem:[%s0] sm:$0xf]
    %v81 = vld [vmem:[%s0 + $0x4] sm:$0xf]
    %v82 = vld [vmem:[#allocation2] sm:$0xff]
    %v83 = vld [vmem:[#allocation2 + $0x8] sm:$0xff]
    %v84 = vld [vmem:[#allocation2 + $0x10] sm:$0xff]
    %v85 = vld [vmem:[#allocation2 + $0x18] sm:$0xff]
    %v86 = vld [vmem:[%s2] sm:$0x3]
    %v88 = vlaneseq
    %v89 = vshrl.u32 %v88, 7
    %v90 = vsub.s32 0, %v89
    %v91 = vrot.slane %v86, %v90
    %v92 = vlaneseq
    %v93 = vshrl.u32 %v92, 7
    %v94 = vsub.s32 1, %v93
    %v95 = vrot.slane %v86, %v94
    %v100 = vunpack.c.l.b16 %v80
    %v101 = vunpack.c.l.b16 %v81
    %v102 = vpack.c.b16 %v101, %v100
    %v107 = vunpack.c.l.b16 %v82
    %v108 = vunpack.c.h.b16 %v82
    %v109 = vunpack.c.l.b16 %v83
    %v110 = vunpack.c.h.b16 %v83
    %v111 = vunpack.c.l.b16 %v84
    %v112 = vunpack.c.h.b16 %v84
    %v113 = vunpack.c.l.b16 %v85
    %v114 = vunpack.c.h.b16 %v85
    %v115 = vpack.c.b16 %v109, %v107
    %v116 = vpack.c.b16 %v110, %v108
    %v117 = vpack.c.b16 %v113, %v111
    %v118 = vpack.c.b16 %v114, %v112
    %vm123 = vcmask 261120
    %v125 = vsel %vm123, %v102, 0
    %127 = vmatprep.subr.bf16.mxu0 %v116
    %128 = vmatpush1.bf16.msra.mxu0 %v115
    %129 = vmatprep.subr.bf16.mxu0 %v118
    %130 = vmatpush1.bf16.msra.mxu0 %v117
    %131 = vmatprep.subr.bf16.mxu0 0
    %132 = vmatpush1.bf16.msra.mxu0 0
    %133 = vmatprep.subr.bf16.mxu0 0
    %134 = vmatpush1.bf16.msra.mxu0 0
    %135 = vmatprep.subr.bf16.mxu0 0
    %136 = vmatpush1.bf16.msra.mxu0 0
    %137 = vmatprep.subr.bf16.mxu0 0
    %138 = vmatpush1.bf16.msra.mxu0 0
    %139 = vmatprep.subr.bf16.mxu0 0
    %140 = vmatpush1.bf16.msra.mxu0 0
    %141 = vmatprep.subr.bf16.mxu0 0
    %142 = vmatpush1.bf16.msra.mxu0 0
    %143 = vmatprep.subr.bf16.mxu0 0
    %144 = vmatpush1.bf16.msra.mxu0 0
    %145 = vmatprep.subr.bf16.mxu0 0
    %146 = vmatpush1.bf16.msra.mxu0 0
    %147 = vmatprep.subr.bf16.mxu0 0
    %148 = vmatpush1.bf16.msra.mxu0 0
    %149 = vmatprep.subr.bf16.mxu0 0
    %150 = vmatpush1.bf16.msra.mxu0 0
    %151 = vmatprep.subr.bf16.mxu0 0
    %152 = vmatpush1.bf16.msra.mxu0 0
    %153 = vmatprep.subr.bf16.mxu0 0
    %154 = vmatpush1.bf16.msra.mxu0 0
    %155 = vmatprep.subr.bf16.mxu0 0
    %156 = vmatpush1.bf16.msra.mxu0 0
    %157 = vmatprep.subr.bf16.mxu0 0
    %158 = vmatpush1.bf16.msra.mxu0 0
    %159 = vmatprep.mubr.bf16.mxu0 0
    %160 = vmatmul.mubr.bf16.gmra.mrb[0].mxu0 %v125
    %v161 = vpop.f32.mrb[0].mxu0
    %v162 = vadd.f32 %v91, %v161
    %v163 = vpop.f32.mrb[0].mxu0
    %v164 = vadd.f32 %v95, %v163
    %v165 = vpop.f32.mrb[0].mxu0
    %v166 = vadd.f32 %v91, %v165
    %v167 = vpop.f32.mrb[0].mxu0
    %v168 = vadd.f32 %v95, %v167
    %169 = vdwg.mxu0
    %v170 = vmul.f32 %v162, 0.2
    %v171 = vmul.f32 %v164, 0.2
    %v172 = vmul.f32 %v166, 0.2
    %v173 = vmul.f32 %v168, 0.2
    %v174 = vmax.f32 %v162, %v170
    %v175 = vmax.f32 %v164, %v171
    %v176 = vmax.f32 %v166, %v172
    %v177 = vmax.f32 %v168, %v173
    %v178 = vpack.c.bf16 %v176, %v174
    %v179 = vpack.c.bf16 %v177, %v175
    %v180 = vld [vmem:[#allocation4] sm:$0xff]
    %v181 = vld [vmem:[#allocation4 + $0x8] sm:$0xff]
    %v182 = vld [vmem:[#allocation4 + $0x10] sm:$0xff]
    %v183 = vld [vmem:[#allocation4 + $0x18] sm:$0xff]
    %v184 = vld [vmem:[#allocation4 + $0x20] sm:$0xff]
    %v185 = vld [vmem:[#allocation4 + $0x28] sm:$0xff]
    %v186 = vld [vmem:[#allocation4 + $0x30] sm:$0xff]
    %v187 = vld [vmem:[#allocation4 + $0x38] sm:$0xff]
    %v188 = vld [vmem:[#allocation4 + $0x40] sm:$0xff]
    %v189 = vld [vmem:[#allocation4 + $0x48] sm:$0xff]
    %v190 = vld [vmem:[#allocation4 + $0x50] sm:$0xff]
    %v191 = vld [vmem:[#allocation4 + $0x58] sm:$0xff]
    %v192 = vld [vmem:[#allocation4 + $0x60] sm:$0xff]
    %v193 = vld [vmem:[#allocation4 + $0x68] sm:$0xff]
    %v194 = vld [vmem:[#allocation4 + $0x70] sm:$0xff]
    %v195 = vld [vmem:[#allocation4 + $0x78] sm:$0xff]
    %v196 = vld [vmem:[#allocation4 + $0x80] sm:$0xff]
    %v197 = vld [vmem:[#allocation4 + $0x88] sm:$0xff]
    %v198 = vld [vmem:[#allocation4 + $0x90] sm:$0xff]
    %v199 = vld [vmem:[#allocation4 + $0x98] sm:$0xff]
    %v200 = vld [vmem:[#allocation4 + $0xa0] sm:$0xff]
    %v201 = vld [vmem:[#allocation4 + $0xa8] sm:$0xff]
    %v202 = vld [vmem:[#allocation4 + $0xb0] sm:$0xff]
    %v203 = vld [vmem:[#allocation4 + $0xb8] sm:$0xff]
    %v204 = vld [vmem:[#allocation4 + $0xc0] sm:$0xff]
    %v205 = vld [vmem:[#allocation4 + $0xc8] sm:$0xff]
    %v206 = vld [vmem:[#allocation4 + $0xd0] sm:$0xff]
    %v207 = vld [vmem:[#allocation4 + $0xd8] sm:$0xff]
    %v208 = vld [vmem:[#allocation4 + $0xe0] sm:$0xff]
    %v209 = vld [vmem:[#allocation4 + $0xe8] sm:$0xff]
    %v210 = vld [vmem:[#allocation4 + $0xf0] sm:$0xff]
    %v211 = vld [vmem:[#allocation4 + $0xf8] sm:$0xff]
    %v212 = vld [vmem:[%s4] sm:$0x3]
    %v214 = vlaneseq
    %v215 = vshrl.u32 %v214, 7
    %v216 = vsub.s32 0, %v215
    %v217 = vrot.slane %v212, %v216
    %v218 = vlaneseq
    %v219 = vshrl.u32 %v218, 7
    %v220 = vsub.s32 1, %v219
    %v221 = vrot.slane %v212, %v220
    %v256 = vunpack.c.l.b16 %v180
    %v257 = vunpack.c.h.b16 %v180
    %v258 = vunpack.c.l.b16 %v181
    %v259 = vunpack.c.h.b16 %v181
    %v260 = vunpack.c.l.b16 %v182
    %v261 = vunpack.c.h.b16 %v182
    %v262 = vunpack.c.l.b16 %v183
    %v263 = vunpack.c.h.b16 %v183
    %v264 = vunpack.c.l.b16 %v184
    %v265 = vunpack.c.h.b16 %v184
    %v266 = vunpack.c.l.b16 %v185
    %v267 = vunpack.c.h.b16 %v185
    %v268 = vunpack.c.l.b16 %v186
    %v269 = vunpack.c.h.b16 %v186
    %v270 = vunpack.c.l.b16 %v187
    %v271 = vunpack.c.h.b16 %v187
    %v272 = vunpack.c.l.b16 %v188
    %v273 = vunpack.c.h.b16 %v188
    %v274 = vunpack.c.l.b16 %v189
    %v275 = vunpack.c.h.b16 %v189
    %v276 = vunpack.c.l.b16 %v190
    %v277 = vunpack.c.h.b16 %v190
    %v278 = vunpack.c.l.b16 %v191
    %v279 = vunpack.c.h.b16 %v191
    %v280 = vunpack.c.l.b16 %v192
    %v281 = vunpack.c.h.b16 %v192
    %v282 = vunpack.c.l.b16 %v193
    %v283 = vunpack.c.h.b16 %v193
    %v284 = vunpack.c.l.b16 %v194
    %v285 = vunpack.c.h.b16 %v194
    %v286 = vunpack.c.l.b16 %v195
    %v287 = vunpack.c.h.b16 %v195
    %v288 = vunpack.c.l.b16 %v196
    %v289 = vunpack.c.h.b16 %v196
    %v290 = vunpack.c.l.b16 %v197
    %v291 = vunpack.c.h.b16 %v197
    %v292 = vunpack.c.l.b16 %v198
    %v293 = vunpack.c.h.b16 %v198
    %v294 = vunpack.c.l.b16 %v199
    %v295 = vunpack.c.h.b16 %v199
    %v296 = vunpack.c.l.b16 %v200
    %v297 = vunpack.c.h.b16 %v200
    %v298 = vunpack.c.l.b16 %v201
    %v299 = vunpack.c.h.b16 %v201
    %v300 = vunpack.c.l.b16 %v202
    %v301 = vunpack.c.h.b16 %v202
    %v302 = vunpack.c.l.b16 %v203
    %v303 = vunpack.c.h.b16 %v203
    %v304 = vunpack.c.l.b16 %v204
    %v305 = vunpack.c.h.b16 %v204
    %v306 = vunpack.c.l.b16 %v205
    %v307 = vunpack.c.h.b16 %v205
    %v308 = vunpack.c.l.b16 %v206
    %v309 = vunpack.c.h.b16 %v206
    %v310 = vunpack.c.l.b16 %v207
    %v311 = vunpack.c.h.b16 %v207
    %v312 = vunpack.c.l.b16 %v208
    %v313 = vunpack.c.h.b16 %v208
    %v314 = vunpack.c.l.b16 %v209
    %v315 = vunpack.c.h.b16 %v209
    %v316 = vunpack.c.l.b16 %v210
    %v317 = vunpack.c.h.b16 %v210
    %v318 = vunpack.c.l.b16 %v211
    %v319 = vunpack.c.h.b16 %v211
    %v320 = vpack.c.b16 %v258, %v256
    %v321 = vpack.c.b16 %v259, %v257
    %v322 = vpack.c.b16 %v262, %v260
    %v323 = vpack.c.b16 %v263, %v261
    %v324 = vpack.c.b16 %v266, %v264
    %v325 = vpack.c.b16 %v267, %v265
    %v326 = vpack.c.b16 %v270, %v268
    %v327 = vpack.c.b16 %v271, %v269
    %v328 = vpack.c.b16 %v274, %v272
    %v329 = vpack.c.b16 %v275, %v273
    %v330 = vpack.c.b16 %v278, %v276
    %v331 = vpack.c.b16 %v279, %v277
    %v332 = vpack.c.b16 %v282, %v280
    %v333 = vpack.c.b16 %v283, %v281
    %v334 = vpack.c.b16 %v286, %v284
    %v335 = vpack.c.b16 %v287, %v285
    %v336 = vpack.c.b16 %v290, %v288
    %v337 = vpack.c.b16 %v291, %v289
    %v338 = vpack.c.b16 %v294, %v292
    %v339 = vpack.c.b16 %v295, %v293
    %v340 = vpack.c.b16 %v298, %v296
    %v341 = vpack.c.b16 %v299, %v297
    %v342 = vpack.c.b16 %v302, %v300
    %v343 = vpack.c.b16 %v303, %v301
    %v344 = vpack.c.b16 %v306, %v304
    %v345 = vpack.c.b16 %v307, %v305
    %v346 = vpack.c.b16 %v310, %v308
    %v347 = vpack.c.b16 %v311, %v309
    %v348 = vpack.c.b16 %v314, %v312
    %v349 = vpack.c.b16 %v315, %v313
    %v350 = vpack.c.b16 %v318, %v316
    %v351 = vpack.c.b16 %v319, %v317
    %384 = vmatprep.subr.bf16.mxu0 %v321
    %385 = vmatpush1.bf16.msra.mxu0 %v320
    %386 = vmatprep.subr.bf16.mxu0 %v323
    %387 = vmatpush1.bf16.msra.mxu0 %v322
    %388 = vmatprep.subr.bf16.mxu0 %v325
    %389 = vmatpush1.bf16.msra.mxu0 %v324
    %390 = vmatprep.subr.bf16.mxu0 %v327
    %391 = vmatpush1.bf16.msra.mxu0 %v326
    %392 = vmatprep.subr.bf16.mxu0 %v329
    %393 = vmatpush1.bf16.msra.mxu0 %v328
    %394 = vmatprep.subr.bf16.mxu0 %v331
    %395 = vmatpush1.bf16.msra.mxu0 %v330
    %396 = vmatprep.subr.bf16.mxu0 %v333
    %397 = vmatpush1.bf16.msra.mxu0 %v332
    %398 = vmatprep.subr.bf16.mxu0 %v335
    %399 = vmatpush1.bf16.msra.mxu0 %v334
    %400 = vmatprep.subr.bf16.mxu0 %v337
    %401 = vmatpush1.bf16.msra.mxu0 %v336
    %402 = vmatprep.subr.bf16.mxu0 %v339
    %403 = vmatpush1.bf16.msra.mxu0 %v338
    %404 = vmatprep.subr.bf16.mxu0 %v341
    %405 = vmatpush1.bf16.msra.mxu0 %v340
    %406 = vmatprep.subr.bf16.mxu0 %v343
    %407 = vmatpush1.bf16.msra.mxu0 %v342
    %408 = vmatprep.subr.bf16.mxu0 %v345
    %409 = vmatpush1.bf16.msra.mxu0 %v344
    %410 = vmatprep.subr.bf16.mxu0 %v347
    %411 = vmatpush1.bf16.msra.mxu0 %v346
    %412 = vmatprep.subr.bf16.mxu0 %v349
    %413 = vmatpush1.bf16.msra.mxu0 %v348
    %414 = vmatprep.subr.bf16.mxu0 %v351
    %415 = vmatpush1.bf16.msra.mxu0 %v350
    %416 = vmatprep.mubr.bf16.mxu0 %v179
    %417 = vmatmul.mubr.bf16.gmra.mrb[0].mxu0 %v178
    %v418 = vpop.f32.mrb[0].mxu0
    %v419 = vadd.f32 %v217, %v418
    %v420 = vpop.f32.mrb[0].mxu0
    %v421 = vadd.f32 %v221, %v420
    %v422 = vpop.f32.mrb[0].mxu0
    %v423 = vadd.f32 %v217, %v422
    %v424 = vpop.f32.mrb[0].mxu0
    %v425 = vadd.f32 %v221, %v424
    %426 = vdwg.mxu0
    %v427 = vmul.f32 %v419, 0.2
    %v428 = vmul.f32 %v421, 0.2
    %v429 = vmul.f32 %v423, 0.2
    %v430 = vmul.f32 %v425, 0.2
    %v431 = vmax.f32 %v419, %v427
    %v432 = vmax.f32 %v421, %v428
    %v433 = vmax.f32 %v423, %v429
    %v434 = vmax.f32 %v425, %v430
    %v435 = vpack.c.bf16 %v433, %v431
    %v436 = vpack.c.bf16 %v434, %v432
    %v437 = vld [vmem:[#allocation6] sm:$0xf]
    %v438 = vld [vmem:[#allocation6 + $0x4] sm:$0xf]
    %v439 = vld [vmem:[#allocation6 + $0x8] sm:$0xf]
    %v440 = vld [vmem:[#allocation6 + $0xc] sm:$0xf]
    %v441 = vld [vmem:[#allocation6 + $0x10] sm:$0xf]
    %v442 = vld [vmem:[#allocation6 + $0x14] sm:$0xf]
    %v443 = vld [vmem:[#allocation6 + $0x18] sm:$0xf]
    %v444 = vld [vmem:[#allocation6 + $0x1c] sm:$0xf]
    %v445 = vld [vmem:[#allocation6 + $0x20] sm:$0xf]
    %v446 = vld [vmem:[#allocation6 + $0x24] sm:$0xf]
    %v447 = vld [vmem:[#allocation6 + $0x28] sm:$0xf]
    %v448 = vld [vmem:[#allocation6 + $0x2c] sm:$0xf]
    %v449 = vld [vmem:[#allocation6 + $0x30] sm:$0xf]
    %v450 = vld [vmem:[#allocation6 + $0x34] sm:$0xf]
    %v451 = vld [vmem:[#allocation6 + $0x38] sm:$0xf]
    %v452 = vld [vmem:[#allocation6 + $0x3c] sm:$0xf]
    %v453 = vld [vmem:[#allocation6 + $0x40] sm:$0xf]
    %v454 = vld [vmem:[#allocation6 + $0x44] sm:$0xf]
    %v455 = vld [vmem:[#allocation6 + $0x48] sm:$0xf]
    %v456 = vld [vmem:[#allocation6 + $0x4c] sm:$0xf]
    %v457 = vld [vmem:[#allocation6 + $0x50] sm:$0xf]
    %v458 = vld [vmem:[#allocation6 + $0x54] sm:$0xf]
    %v459 = vld [vmem:[#allocation6 + $0x58] sm:$0xf]
    %v460 = vld [vmem:[#allocation6 + $0x5c] sm:$0xf]
    %v461 = vld [vmem:[#allocation6 + $0x60] sm:$0xf]
    %v462 = vld [vmem:[#allocation6 + $0x64] sm:$0xf]
    %v463 = vld [vmem:[#allocation6 + $0x68] sm:$0xf]
    %v464 = vld [vmem:[#allocation6 + $0x6c] sm:$0xf]
    %v465 = vld [vmem:[#allocation6 + $0x70] sm:$0xf]
    %v466 = vld [vmem:[#allocation6 + $0x74] sm:$0xf]
    %v467 = vld [vmem:[#allocation6 + $0x78] sm:$0xf]
    %v468 = vld [vmem:[#allocation6 + $0x7c] sm:$0xf]
    %v469 = vld [vmem:[%s6] sm:$0x1]
    %v471 = vlaneseq
    %v472 = vshrl.u32 %v471, 7
    %v473 = vsub.s32 0, %v472
    %v474 = vrot.slane %v469, %v473
    %v508 = vunpack.c.l.b16 %v437
    %v509 = vunpack.c.l.b16 %v438
    %v510 = vunpack.c.l.b16 %v439
    %v511 = vunpack.c.l.b16 %v440
    %v512 = vunpack.c.l.b16 %v441
    %v513 = vunpack.c.l.b16 %v442
    %v514 = vunpack.c.l.b16 %v443
    %v515 = vunpack.c.l.b16 %v444
    %v516 = vunpack.c.l.b16 %v445
    %v517 = vunpack.c.l.b16 %v446
    %v518 = vunpack.c.l.b16 %v447
    %v519 = vunpack.c.l.b16 %v448
    %v520 = vunpack.c.l.b16 %v449
    %v521 = vunpack.c.l.b16 %v450
    %v522 = vunpack.c.l.b16 %v451
    %v523 = vunpack.c.l.b16 %v452
    %v524 = vunpack.c.l.b16 %v453
    %v525 = vunpack.c.l.b16 %v454
    %v526 = vunpack.c.l.b16 %v455
    %v527 = vunpack.c.l.b16 %v456
    %v528 = vunpack.c.l.b16 %v457
    %v529 = vunpack.c.l.b16 %v458
    %v530 = vunpack.c.l.b16 %v459
    %v531 = vunpack.c.l.b16 %v460
    %v532 = vunpack.c.l.b16 %v461
    %v533 = vunpack.c.l.b16 %v462
    %v534 = vunpack.c.l.b16 %v463
    %v535 = vunpack.c.l.b16 %v464
    %v536 = vunpack.c.l.b16 %v465
    %v537 = vunpack.c.l.b16 %v466
    %v538 = vunpack.c.l.b16 %v467
    %v539 = vunpack.c.l.b16 %v468
    %v540 = vpack.c.b16 %v509, %v508
    %v541 = vpack.c.b16 %v511, %v510
    %v542 = vpack.c.b16 %v513, %v512
    %v543 = vpack.c.b16 %v515, %v514
    %v544 = vpack.c.b16 %v517, %v516
    %v545 = vpack.c.b16 %v519, %v518
    %v546 = vpack.c.b16 %v521, %v520
    %v547 = vpack.c.b16 %v523, %v522
    %v548 = vpack.c.b16 %v525, %v524
    %v549 = vpack.c.b16 %v527, %v526
    %v550 = vpack.c.b16 %v529, %v528
    %v551 = vpack.c.b16 %v531, %v530
    %v552 = vpack.c.b16 %v533, %v532
    %v553 = vpack.c.b16 %v535, %v534
    %v554 = vpack.c.b16 %v537, %v536
    %v555 = vpack.c.b16 %v539, %v538
    %572 = vmatprep.subr.bf16.mxu0 0
    %573 = vmatpush1.bf16.msra.mxu0 %v540
    %574 = vmatprep.subr.bf16.mxu0 0
    %575 = vmatpush1.bf16.msra.mxu0 %v541
    %576 = vmatprep.subr.bf16.mxu0 0
    %577 = vmatpush1.bf16.msra.mxu0 %v542
    %578 = vmatprep.subr.bf16.mxu0 0
    %579 = vmatpush1.bf16.msra.mxu0 %v543
    %580 = vmatprep.subr.bf16.mxu0 0
    %581 = vmatpush1.bf16.msra.mxu0 %v544
    %582 = vmatprep.subr.bf16.mxu0 0
    %583 = vmatpush1.bf16.msra.mxu0 %v545
    %584 = vmatprep.subr.bf16.mxu0 0
    %585 = vmatpush1.bf16.msra.mxu0 %v546
    %586 = vmatprep.subr.bf16.mxu0 0
    %587 = vmatpush1.bf16.msra.mxu0 %v547
    %588 = vmatprep.subr.bf16.mxu0 0
    %589 = vmatpush1.bf16.msra.mxu0 %v548
    %590 = vmatprep.subr.bf16.mxu0 0
    %591 = vmatpush1.bf16.msra.mxu0 %v549
    %592 = vmatprep.subr.bf16.mxu0 0
    %593 = vmatpush1.bf16.msra.mxu0 %v550
    %594 = vmatprep.subr.bf16.mxu0 0
    %595 = vmatpush1.bf16.msra.mxu0 %v551
    %596 = vmatprep.subr.bf16.mxu0 0
    %597 = vmatpush1.bf16.msra.mxu0 %v552
    %598 = vmatprep.subr.bf16.mxu0 0
    %599 = vmatpush1.bf16.msra.mxu0 %v553
    %600 = vmatprep.subr.bf16.mxu0 0
    %601 = vmatpush1.bf16.msra.mxu0 %v554
    %602 = vmatprep.subr.bf16.mxu0 0
    %603 = vmatpush1.bf16.msra.mxu0 %v555
    %604 = vmatprep.mubr.bf16.mxu0 %v436
    %605 = vmatmul.mubr.bf16.gmra.mrb[0].mxu0 %v435
    %v606 = vpop.f32.mrb[0].mxu0
    %v607 = vadd.f32 %v474, %v606
    %v608 = vpop.f32.mrb[0].mxu0
    %v609 = vpop.f32.mrb[0].mxu0
    %v610 = vadd.f32 %v474, %v609
    %v611 = vpop.f32.mrb[0].mxu0
    %612 = vdwg.mxu0
    %v613 = vmul.f32 %v607, 0.2
    %v614 = vmul.f32 %v610, 0.2
    %v615 = vmax.f32 %v607, %v613
    %v616 = vmax.f32 %v610, %v614
    %v617 = vpack.c.bf16 %v616, %v615
    %v618 = vld [vmem:[%s7] sm:$0xf]
    %v619 = vld [vmem:[%s7 + $0x4] sm:$0xf]
    %v620 = vld [vmem:[%s7 + $0x8] sm:$0xf]
    %v621 = vld [vmem:[%s7 + $0xc] sm:$0xf]
    %v622 = vld [vmem:[%s7 + $0x10] sm:$0xf]
    %v623 = vld [vmem:[%s7 + $0x14] sm:$0xf]
    %v624 = vld [vmem:[%s7 + $0x18] sm:$0xf]
    %v625 = vld [vmem:[%s7 + $0x1c] sm:$0xf]
    %v626 = vld [vmem:[%s7 + $0x20] sm:$0xf]
    %v627 = vld [vmem:[%s7 + $0x24] sm:$0xf]
    %v628 = vld [vmem:[%s7 + $0x28] sm:$0xf]
    %v629 = vld [vmem:[%s7 + $0x2c] sm:$0xf]
    %v630 = vld [vmem:[%s7 + $0x30] sm:$0xf]
    %v631 = vld [vmem:[%s7 + $0x34] sm:$0xf]
    %v632 = vld [vmem:[%s7 + $0x38] sm:$0xf]
    %v633 = vld [vmem:[%s7 + $0x3c] sm:$0xf]
    %v634 = vld [vmem:[%s8] sm:$0x1]
    %v636 = vlaneseq
    %v637 = vshrl.u32 %v636, 7
    %v638 = vsub.s32 0, %v637
    %v639 = vrot.slane %v634, %v638
    %v657 = vunpack.c.l.b16 %v618
    %v658 = vunpack.c.l.b16 %v619
    %v659 = vunpack.c.l.b16 %v620
    %v660 = vunpack.c.l.b16 %v621
    %v661 = vunpack.c.l.b16 %v622
    %v662 = vunpack.c.l.b16 %v623
    %v663 = vunpack.c.l.b16 %v624
    %v664 = vunpack.c.l.b16 %v625
    %v665 = vunpack.c.l.b16 %v626
    %v666 = vunpack.c.l.b16 %v627
    %v667 = vunpack.c.l.b16 %v628
    %v668 = vunpack.c.l.b16 %v629
    %v669 = vunpack.c.l.b16 %v630
    %v670 = vunpack.c.l.b16 %v631
    %v671 = vunpack.c.l.b16 %v632
    %v672 = vunpack.c.l.b16 %v633
    %v673 = vpack.c.b16 %v658, %v657
    %v674 = vpack.c.b16 %v660, %v659
    %v675 = vpack.c.b16 %v662, %v661
    %v676 = vpack.c.b16 %v664, %v663
    %v677 = vpack.c.b16 %v666, %v665
    %v678 = vpack.c.b16 %v668, %v667
    %v679 = vpack.c.b16 %v670, %v669
    %v680 = vpack.c.b16 %v672, %v671
    %689 = vmatprep.subr.bf16.mxu0 0
    %690 = vmatpush1.bf16.msra.mxu0 %v673
    %691 = vmatprep.subr.bf16.mxu0 0
    %692 = vmatpush1.bf16.msra.mxu0 %v674
    %693 = vmatprep.subr.bf16.mxu0 0
    %694 = vmatpush1.bf16.msra.mxu0 %v675
    %695 = vmatprep.subr.bf16.mxu0 0
    %696 = vmatpush1.bf16.msra.mxu0 %v676
    %697 = vmatprep.subr.bf16.mxu0 0
    %698 = vmatpush1.bf16.msra.mxu0 %v677
    %699 = vmatprep.subr.bf16.mxu0 0
    %700 = vmatpush1.bf16.msra.mxu0 %v678
    %701 = vmatprep.subr.bf16.mxu0 0
    %702 = vmatpush1.bf16.msra.mxu0 %v679
    %703 = vmatprep.subr.bf16.mxu0 0
    %704 = vmatpush1.bf16.msra.mxu0 %v680
    %705 = vmatprep.subr.bf16.mxu0 0
    %706 = vmatpush1.bf16.msra.mxu0 0
    %707 = vmatprep.subr.bf16.mxu0 0
    %708 = vmatpush1.bf16.msra.mxu0 0
    %709 = vmatprep.subr.bf16.mxu0 0
    %710 = vmatpush1.bf16.msra.mxu0 0
    %711 = vmatprep.subr.bf16.mxu0 0
    %712 = vmatpush1.bf16.msra.mxu0 0
    %713 = vmatprep.subr.bf16.mxu0 0
    %714 = vmatpush1.bf16.msra.mxu0 0
    %715 = vmatprep.subr.bf16.mxu0 0
    %716 = vmatpush1.bf16.msra.mxu0 0
    %717 = vmatprep.subr.bf16.mxu0 0
    %718 = vmatpush1.bf16.msra.mxu0 0
    %719 = vmatprep.subr.bf16.mxu0 0
    %720 = vmatpush1.bf16.msra.mxu0 0
    %721 = vmatprep.mubr.bf16.mxu0 0
    %722 = vmatmul.mubr.bf16.gmra.mrb[0].mxu0 %v617
    %v723 = vpop.f32.mrb[0].mxu0
    %v724 = vadd.f32 %v639, %v723
    %v725 = vpop.f32.mrb[0].mxu0
    %v726 = vpop.f32.mrb[0].mxu0
    %v727 = vadd.f32 %v639, %v726
    %v728 = vpop.f32.mrb[0].mxu0
    %729 = vdwg.mxu0
    %v730 = vmul.f32 %v724, 0.2
    %v731 = vmul.f32 %v727, 0.2
    %v732 = vmax.f32 %v724, %v730
    %v733 = vmax.f32 %v727, %v731
    %v734 = vpack.c.bf16 %v733, %v732
    %v735 = vld [vmem:[%s9] sm:$0xf]
    %v736 = vld [vmem:[%s9 + $0x4] sm:$0xf]
    %v737 = vld [vmem:[%s9 + $0x8] sm:$0xf]
    %v738 = vld [vmem:[%s9 + $0xc] sm:$0xf]
    %v739 = vld [vmem:[%s9 + $0x10] sm:$0xf]
    %v740 = vld [vmem:[%s9 + $0x14] sm:$0xf]
    %v741 = vld [vmem:[%s9 + $0x18] sm:$0xf]
    %v742 = vld [vmem:[%s9 + $0x1c] sm:$0xf]
    %v743 = vld [vmem:[%s9 + $0x20] sm:$0xf]
    %v744 = vld [vmem:[%s9 + $0x24] sm:$0xf]
    %v745 = vld [vmem:[%s9 + $0x28] sm:$0xf]
    %v746 = vld [vmem:[%s9 + $0x2c] sm:$0xf]
    %v747 = vld [vmem:[%s9 + $0x30] sm:$0xf]
    %v748 = vld [vmem:[%s9 + $0x34] sm:$0xf]
    %v749 = vld [vmem:[%s9 + $0x38] sm:$0xf]
    %v750 = vld [vmem:[%s9 + $0x3c] sm:$0xf]
    %v751 = vld [vmem:[%s10] sm:$0x1]
    %v753 = vlaneseq
    %v754 = vshrl.u32 %v753, 7
    %v755 = vsub.s32 0, %v754
    %v756 = vrot.slane %v751, %v755
    %v774 = vunpack.c.l.b16 %v735
    %v775 = vunpack.c.l.b16 %v736
    %v776 = vunpack.c.l.b16 %v737
    %v777 = vunpack.c.l.b16 %v738
    %v778 = vunpack.c.l.b16 %v739
    %v779 = vunpack.c.l.b16 %v740
    %v780 = vunpack.c.l.b16 %v741
    %v781 = vunpack.c.l.b16 %v742
    %v782 = vunpack.c.l.b16 %v743
    %v783 = vunpack.c.l.b16 %v744
    %v784 = vunpack.c.l.b16 %v745
    %v785 = vunpack.c.l.b16 %v746
    %v786 = vunpack.c.l.b16 %v747
    %v787 = vunpack.c.l.b16 %v748
    %v788 = vunpack.c.l.b16 %v749
    %v789 = vunpack.c.l.b16 %v750
    %v790 = vpack.c.b16 %v775, %v774
    %v791 = vpack.c.b16 %v777, %v776
    %v792 = vpack.c.b16 %v779, %v778
    %v793 = vpack.c.b16 %v781, %v780
    %v794 = vpack.c.b16 %v783, %v782
    %v795 = vpack.c.b16 %v785, %v784
    %v796 = vpack.c.b16 %v787, %v786
    %v797 = vpack.c.b16 %v789, %v788
    %806 = vmatprep.subr.bf16.mxu0 0
    %807 = vmatpush1.bf16.msra.mxu0 %v790
    %808 = vmatprep.subr.bf16.mxu0 0
    %809 = vmatpush1.bf16.msra.mxu0 %v791
    %810 = vmatprep.subr.bf16.mxu0 0
    %811 = vmatpush1.bf16.msra.mxu0 %v792
    %812 = vmatprep.subr.bf16.mxu0 0
    %813 = vmatpush1.bf16.msra.mxu0 %v793
    %814 = vmatprep.subr.bf16.mxu0 0
    %815 = vmatpush1.bf16.msra.mxu0 %v794
    %816 = vmatprep.subr.bf16.mxu0 0
    %817 = vmatpush1.bf16.msra.mxu0 %v795
    %818 = vmatprep.subr.bf16.mxu0 0
    %819 = vmatpush1.bf16.msra.mxu0 %v796
    %820 = vmatprep.subr.bf16.mxu0 0
    %821 = vmatpush1.bf16.msra.mxu0 %v797
    %822 = vmatprep.subr.bf16.mxu0 0
    %823 = vmatpush1.bf16.msra.mxu0 0
    %824 = vmatprep.subr.bf16.mxu0 0
    %825 = vmatpush1.bf16.msra.mxu0 0
    %826 = vmatprep.subr.bf16.mxu0 0
    %827 = vmatpush1.bf16.msra.mxu0 0
    %828 = vmatprep.subr.bf16.mxu0 0
    %829 = vmatpush1.bf16.msra.mxu0 0
    %830 = vmatprep.subr.bf16.mxu0 0
    %831 = vmatpush1.bf16.msra.mxu0 0
    %832 = vmatprep.subr.bf16.mxu0 0
    %833 = vmatpush1.bf16.msra.mxu0 0
    %834 = vmatprep.subr.bf16.mxu0 0
    %835 = vmatpush1.bf16.msra.mxu0 0
    %836 = vmatprep.subr.bf16.mxu0 0
    %837 = vmatpush1.bf16.msra.mxu0 0
    %838 = vmatprep.mubr.bf16.mxu0 0
    %839 = vmatmul.mubr.bf16.gmra.mrb[0].mxu0 %v734
    %v840 = vpop.f32.mrb[0].mxu0
    %v841 = vadd.f32 %v756, %v840
    %v842 = vpop.f32.mrb[0].mxu0
    %v843 = vpop.f32.mrb[0].mxu0
    %v844 = vadd.f32 %v756, %v843
    %v845 = vpop.f32.mrb[0].mxu0
    %846 = vdwg.mxu0
    %vm847 = vcmask 64512
    %848 = vst.msk [vmem:[%s11] sm:$0xff] %vm847, %v841
    %849 = vst.msk [vmem:[%s11 + $0x8] sm:$0xff] %vm847, %v844
    // Predicated region
    $region58: #{tpu_custom_call.1} parent=1 // pred_check
      _
    $region59: #{tpu_custom_call.1} parent=1 // pred_check_branch
      %851 = sbr.rel (0) target = $region61
    $region60: #{tpu_custom_call.1} parent=1 // pred_region
      _
    $region61: #{tpu_custom_call.1} parent=1 // pred_fallthru
      _
    // Predicated region
    $region62: #{tpu_custom_call.1} parent=1 // pred_check
      _
    $region63: #{tpu_custom_call.1} parent=1 // pred_check_branch
      %853 = sbr.rel (0) target = $region65
    $region64: #{tpu_custom_call.1} parent=1 // pred_region
      _
    $region65: #{tpu_custom_call.1} parent=1 // pred_fallthru
      _
    %854 = vsyncpa [#allocation3], 1
    %855 = vsyncpa [#allocation5], 1

</llo_original>
